<compile_context>
chip_gen: v6e
topology: v6e:2x2x1
jax: 0.10.0
libtpu: 0.0.40
codegen_flags: <defaults>
</compile_context>

<pallas_src>
import jax
import jax.numpy as jnp
from jax import lax
from jax.experimental import pallas as pl
from jax.experimental.pallas import tpu as pltpu

# ---- SiglipVisionConfig-like hyperparameters (small, synthetic) -------------
B = 2              # batch
S = 8              # num patches (sequence length)
D = 32             # hidden_size (embed_dim)
NUM_HEADS = 4
HEAD_DIM = D // NUM_HEADS
INTER = 64         # intermediate_size
EPS = 1e-6         # layer_norm_eps
SCALE = HEAD_DIM ** -0.5
_SQRT_2_OVER_PI = 0.7978845608028654

BS = B * S                    # batch folded into rows
HBS = NUM_HEADS * BS          # heads folded into the key/lane dimension
LANES = 128                   # lane-dense slab width
WROWS = 2 * D + INTER         # 128 rows: [wqkv|wo] / [w1|keep] / [w2|segm|vmask]
VROWS = 8                     # vector slab rows (one sublane tile)


def _layer_norm(x, w, b):
    # PyTorch nn.LayerNorm: population variance over last dim, centered form.
    mu = jnp.mean(x, axis=-1, keepdims=True)
    xc = x - mu
    var = jnp.mean(xc * xc, axis=-1, keepdims=True)
    return xc * lax.rsqrt(var + EPS) * w + b


def _gelu_tanh(x):
    # gelu_pytorch_tanh approximation.
    return 0.5 * x * (1.0 + jnp.tanh(_SQRT_2_OVER_PI * (x + 0.044715 * x * x * x)))


def encoder_layer_kernel(x_ref, w_ref, vec_ref, o_ref):
    x = x_ref[...]                                            # (BS, D) f32

    # ---- carve the packed slabs with static ref views (no extra DMAs) ------
    wqkv  = w_ref[0:D, 0:3 * D]                               # (D, 3D)  q cols pre-scaled
    wo    = w_ref[0:D, 3 * D:4 * D]                           # (D, D)
    w1    = w_ref[D:2 * D, 0:INTER]                           # (D, INTER)
    keep  = w_ref[D:D + BS, INTER:INTER + HBS]                # (BS, HBS) same-image mask
    w2    = w_ref[2 * D:2 * D + INTER, 0:D]                   # (INTER, D)
    segm  = w_ref[2 * D:2 * D + INTER, D:D + HBS]             # (HBS, HBS) per-block sum
    vmask = w_ref[2 * D:2 * D + INTER, D + HBS:2 * D + HBS]   # (HBS, D) head block-diag

    bqkv  = vec_ref[0:1, 0:3 * D]
    bo    = vec_ref[0:1, 3 * D:4 * D]
    b1    = vec_ref[1:2, 0:INTER]
    b2    = vec_ref[1:2, INTER:INTER + D]
    ln1_w = vec_ref[2:3, 0:D]
    ln1_b = vec_ref[2:3, D:2 * D]
    ln2_w = vec_ref[2:3, 2 * D:3 * D]
    ln2_b = vec_ref[2:3, 3 * D:4 * D]

    # ---- residual 1: layer_norm1 + multi-head self-attention ----------------
    h = _layer_norm(x, ln1_w, ln1_b)
    qkv = jnp.dot(h, wqkv, preferred_element_type=jnp.float32) + bqkv   # (BS, 3D)
    q = qkv[:, 0:D]              # attention scale already folded into wqkv/bqkv
    k = qkv[:, D:2 * D]
    v = qkv[:, 2 * D:3 * D]

    # Heads folded into the lane dim via block-diagonal K / V operands:
    #   k_bd[h*BS + s, d] = k[s, d] * (d // HEAD_DIM == h)
    # so one wide MXU contraction per stage replaces H tiny per-head matmuls
    # and no 3-D reshapes/transposes are needed for split or merge.
    k_bd = jnp.concatenate([k] * NUM_HEADS, axis=0) * vmask   # (HBS, D)
    v_bd = jnp.concatenate([v] * NUM_HEADS, axis=0) * vmask   # (HBS, D)

    scores = jnp.einsum('qd,jd->qj', q, k_bd,
                        preferred_element_type=jnp.float32)   # (BS, HBS)
    # Per-row shift (a constant per query row): softmax is shift-invariant per
    # head block, and the row max bounds every exp argument by 0 (no overflow).
    scores = scores - jnp.max(scores, axis=-1, keepdims=True)
    e = jnp.exp(scores) * keep                                # zero cross-image keys
    denom = jnp.dot(e, segm, preferred_element_type=jnp.float32)  # per-head-block sums
    probs = e / denom                                         # exact (1e-4 tolerance)
    attn = jnp.dot(probs, v_bd, preferred_element_type=jnp.float32)   # (BS, D), heads merged
    attn = jnp.dot(attn, wo, preferred_element_type=jnp.float32) + bo

    x = x + attn

    # ---- residual 2: layer_norm2 + MLP ---------------------------------------
    h2 = _layer_norm(x, ln2_w, ln2_b)
    h2 = jnp.dot(h2, w1, preferred_element_type=jnp.float32) + b1
    h2 = _gelu_tanh(h2)
    h2 = jnp.dot(h2, w2, preferred_element_type=jnp.float32) + b2

    o_ref[...] = x + h2


def _pack_params(p):
    """Pack all parameters + constant layout masks into two lane-dense slabs."""
    f32 = jnp.float32
    # fused QKV with the attention scale folded into the Q columns
    wqkv = jnp.concatenate([p["wq"] * SCALE, p["wk"], p["wv"]], axis=1)   # (D, 3D)
    bqkv = jnp.concatenate([p["bq"] * SCALE, p["bk"], p["bv"]], axis=1)   # (1, 3D)

    # constant attention-layout masks
    j64 = jnp.arange(HBS)
    dD = jnp.arange(D)
    qB = jnp.arange(BS)
    vmask = (j64[:, None] // BS == dD[None, :] // HEAD_DIM).astype(f32)   # (HBS, D)
    segm = (j64[:, None] // BS == j64[None, :] // BS).astype(f32)         # (HBS, HBS)
    keep = (qB[:, None] // S == (j64[None, :] % BS) // S).astype(f32)     # (BS, HBS)

    w = jnp.zeros((WROWS, LANES), f32)
    w = w.at[0:D, 0:3 * D].set(wqkv)
    w = w.at[0:D, 3 * D:4 * D].set(p["wo"])
    w = w.at[D:2 * D, 0:INTER].set(p["w1"])
    w = w.at[D:D + BS, INTER:INTER + HBS].set(keep)
    w = w.at[2 * D:2 * D + INTER, 0:D].set(p["w2"])
    w = w.at[2 * D:2 * D + INTER, D:D + HBS].set(segm)
    w = w.at[2 * D:2 * D + INTER, D + HBS:2 * D + HBS].set(vmask)

    vec = jnp.zeros((VROWS, LANES), f32)
    vec = vec.at[0:1, 0:3 * D].set(bqkv)
    vec = vec.at[0:1, 3 * D:4 * D].set(p["bo"])
    vec = vec.at[1:2, 0:INTER].set(p["b1"])
    vec = vec.at[1:2, INTER:INTER + D].set(p["b2"])
    vec = vec.at[2:3, 0:D].set(p["ln1_w"])
    vec = vec.at[2:3, D:2 * D].set(p["ln1_b"])
    vec = vec.at[2:3, 2 * D:3 * D].set(p["ln2_w"])
    vec = vec.at[2:3, 3 * D:4 * D].set(p["ln2_b"])
    return w, vec


@jax.jit
def siglip_encoder_layer(x, params):
    """x: (B, S, D) float32.  params: dict of unfused weights (see init_params)."""
    wslab, vslab = _pack_params(params)
    x2d = x.reshape(BS, D)          # fold batch into rows (free layout reshape)

    def full(shape):
        return pl.BlockSpec(shape, lambda i: (0,) * len(shape))

    out2d = pl.pallas_call(
        encoder_layer_kernel,
        out_shape=jax.ShapeDtypeStruct((BS, D), jnp.float32),
        grid_spec=pltpu.PrefetchScalarGridSpec(
            num_scalar_prefetch=0,
            grid=(1,),
            in_specs=[
                full((BS, D)),            # activations (batch folded into rows)
                full((WROWS, LANES)),     # weight slab: wqkv|wo / w1|keep / w2|segm|vmask
                full((VROWS, LANES)),     # vector slab: biases + LN params
            ],
            out_specs=full((BS, D)),
        ),
        compiler_params=pltpu.CompilerParams(dimension_semantics=("arbitrary",)),
    )(x2d, wslab, vslab)

    return out2d.reshape(B, S, D)


def init_params(key):
    ks = jax.random.split(key, 16)
    w = lambda k, shape: (0.02 * jax.random.normal(k, shape)).astype(jnp.float32)
    b = lambda k, shape: (0.01 * jax.random.normal(k, shape)).astype(jnp.float32)
    return {
        "ln1_w": (1.0 + 0.05 * jax.random.normal(ks[0], (1, D))).astype(jnp.float32),
        "ln1_b": b(ks[1], (1, D)),
        "wq": w(ks[2], (D, D)), "bq": b(ks[3], (1, D)),
        "wk": w(ks[4], (D, D)), "bk": b(ks[5], (1, D)),
        "wv": w(ks[6], (D, D)), "bv": b(ks[7], (1, D)),
        "wo": w(ks[8], (D, D)), "bo": b(ks[9], (1, D)),
        "ln2_w": (1.0 + 0.05 * jax.random.normal(ks[10], (1, D))).astype(jnp.float32),
        "ln2_b": b(ks[11], (1, D)),
        "w1": w(ks[12], (D, INTER)), "b1": b(ks[13], (1, INTER)),
        "w2": w(ks[14], (INTER, D)), "b2": b(ks[15], (1, D)),
    }


def reference(x, p):
    def ln(v, w, b):
        mu = jnp.mean(v, axis=-1, keepdims=True)
        var = jnp.mean((v - mu) ** 2, axis=-1, keepdims=True)
        return (v - mu) / jnp.sqrt(var + EPS) * w + b

    h = ln(x, p["ln1_w"], p["ln1_b"])
    q = (h @ p["wq"] + p["bq"]) * SCALE
    k = h @ p["wk"] + p["bk"]
    v = h @ p["wv"] + p["bv"]
    q = q.reshape(B, S, NUM_HEADS, HEAD_DIM).transpose(0, 2, 1, 3)
    k = k.reshape(B, S, NUM_HEADS, HEAD_DIM).transpose(0, 2, 1, 3)
    v = v.reshape(B, S, NUM_HEADS, HEAD_DIM).transpose(0, 2, 1, 3)
    scores = jnp.einsum("bhqd,bhkd->bhqk", q, k)
    probs = jax.nn.softmax(scores, axis=-1)
    attn = jnp.einsum("bhqk,bhkd->bhqd", probs, v)
    attn = attn.transpose(0, 2, 1, 3).reshape(B, S, D)
    attn = attn @ p["wo"] + p["bo"]
    x = x + attn
    h2 = ln(x, p["ln2_w"], p["ln2_b"])
    h2 = h2 @ p["w1"] + p["b1"]
    h2 = 0.5 * h2 * (1.0 + jnp.tanh(_SQRT_2_OVER_PI * (h2 + 0.044715 * h2 ** 3)))
    h2 = h2 @ p["w2"] + p["b2"]
    return x + h2


if __name__ == "__main__":
    key = jax.random.PRNGKey(0)
    k_x, k_p = jax.random.split(key)
    x = jax.random.normal(k_x, (B, S, D), dtype=jnp.float32)
    params = init_params(k_p)

    out = siglip_encoder_layer(x, params)
    out = jax.block_until_ready(out)

    ref = reference(x, params)
    assert out.shape == (B, S, D)
    assert jnp.allclose(out, ref, atol=1e-4, rtol=1e-4), "mismatch vs JAX reference"
    print("KERNEL_OK")
</pallas_src>

<mosaic_0001>
module attributes {stable_mosaic.version = 11 : i64} {
  func.func @encoder_layer_kernel(%arg0: i32, %arg1: memref<16x32xf32, #tpu.memory_space<vmem>>, %arg2: memref<128x128xf32, #tpu.memory_space<vmem>>, %arg3: memref<8x128xf32, #tpu.memory_space<vmem>>, %arg4: memref<16x32xf32, #tpu.memory_space<vmem>>) attributes {dimension_semantics = [#tpu.dimension_semantics<arbitrary>], iteration_bounds = array<i64: 1>, scalar_prefetch = 0 : i64, scratch_operands = 0 : i64, tpu.core_type = #tpu.core_type<tc>, window_params = [{pipeline_mode = #tpu.pipeline_mode<synchronous>, transform_indices = @transform_0, window_bounds = array<i64: 16, 32>}, {pipeline_mode = #tpu.pipeline_mode<synchronous>, transform_indices = @transform_1, window_bounds = array<i64: 128, 128>}, {pipeline_mode = #tpu.pipeline_mode<synchronous>, transform_indices = @transform_2, window_bounds = array<i64: 8, 128>}, {pipeline_mode = #tpu.pipeline_mode<synchronous>, transform_indices = @transform_3, window_bounds = array<i64: 16, 32>}]} {
    %c0 = arith.constant 0 : index
    %c0_0 = arith.constant 0 : index
    %0 = vector.load %arg1[%c0, %c0_0] : memref<16x32xf32, #tpu.memory_space<vmem>>, vector<16x32xf32>
    %c0_1 = arith.constant 0 : index
    %c0_2 = arith.constant 0 : index
    %1 = vector.load %arg2[%c0_1, %c0_2] : memref<128x128xf32, #tpu.memory_space<vmem>>, vector<32x96xf32>
    %c0_3 = arith.constant 0 : index
    %c96 = arith.constant 96 : index
    %2 = vector.load %arg2[%c0_3, %c96] : memref<128x128xf32, #tpu.memory_space<vmem>>, vector<32x32xf32>
    %c32 = arith.constant 32 : index
    %c0_4 = arith.constant 0 : index
    %3 = vector.load %arg2[%c32, %c0_4] : memref<128x128xf32, #tpu.memory_space<vmem>>, vector<32x64xf32>
    %c32_5 = arith.constant 32 : index
    %c64 = arith.constant 64 : index
    %4 = vector.load %arg2[%c32_5, %c64] : memref<128x128xf32, #tpu.memory_space<vmem>>, vector<16x64xf32>
    %c64_6 = arith.constant 64 : index
    %c0_7 = arith.constant 0 : index
    %5 = vector.load %arg2[%c64_6, %c0_7] : memref<128x128xf32, #tpu.memory_space<vmem>>, vector<64x32xf32>
    %c64_8 = arith.constant 64 : index
    %c32_9 = arith.constant 32 : index
    %6 = vector.load %arg2[%c64_8, %c32_9] : memref<128x128xf32, #tpu.memory_space<vmem>>, vector<64x64xf32>
    %c64_10 = arith.constant 64 : index
    %c96_11 = arith.constant 96 : index
    %7 = vector.load %arg2[%c64_10, %c96_11] : memref<128x128xf32, #tpu.memory_space<vmem>>, vector<64x32xf32>
    %c0_12 = arith.constant 0 : index
    %c0_13 = arith.constant 0 : index
    %8 = vector.load %arg3[%c0_12, %c0_13] : memref<8x128xf32, #tpu.memory_space<vmem>>, vector<1x96xf32>
    %c0_14 = arith.constant 0 : index
    %c96_15 = arith.constant 96 : index
    %9 = vector.load %arg3[%c0_14, %c96_15] : memref<8x128xf32, #tpu.memory_space<vmem>>, vector<1x32xf32>
    %c1 = arith.constant 1 : index
    %c0_16 = arith.constant 0 : index
    %10 = vector.load %arg3[%c1, %c0_16] : memref<8x128xf32, #tpu.memory_space<vmem>>, vector<1x64xf32>
    %c1_17 = arith.constant 1 : index
    %c64_18 = arith.constant 64 : index
    %11 = vector.load %arg3[%c1_17, %c64_18] : memref<8x128xf32, #tpu.memory_space<vmem>>, vector<1x32xf32>
    %c2 = arith.constant 2 : index
    %c0_19 = arith.constant 0 : index
    %12 = vector.load %arg3[%c2, %c0_19] : memref<8x128xf32, #tpu.memory_space<vmem>>, vector<1x32xf32>
    %c2_20 = arith.constant 2 : index
    %c32_21 = arith.constant 32 : index
    %13 = vector.load %arg3[%c2_20, %c32_21] : memref<8x128xf32, #tpu.memory_space<vmem>>, vector<1x32xf32>
    %c2_22 = arith.constant 2 : index
    %c64_23 = arith.constant 64 : index
    %14 = vector.load %arg3[%c2_22, %c64_23] : memref<8x128xf32, #tpu.memory_space<vmem>>, vector<1x32xf32>
    %c2_24 = arith.constant 2 : index
    %c96_25 = arith.constant 96 : index
    %15 = vector.load %arg3[%c2_24, %c96_25] : memref<8x128xf32, #tpu.memory_space<vmem>>, vector<1x32xf32>
    %cst = arith.constant dense<0.000000e+00> : vector<16xf32>
    %16 = vector.multi_reduction <add>, %0, %cst [1] : vector<16x32xf32> to vector<16xf32>
    %17 = vector.shape_cast %16 : vector<16xf32> to vector<16x1xf32>
    %cst_26 = arith.constant 3.200000e+01 : f32
    %18 = vector.broadcast %cst_26 : f32 to vector<16x1xf32>
    %19 = arith.divf %17, %18 : vector<16x1xf32>
    %20 = vector.broadcast %19 : vector<16x1xf32> to vector<16x32xf32>
    %21 = arith.subf %0, %20 : vector<16x32xf32>
    %22 = arith.mulf %21, %21 : vector<16x32xf32>
    %cst_27 = arith.constant dense<0.000000e+00> : vector<16xf32>
    %23 = vector.multi_reduction <add>, %22, %cst_27 [1] : vector<16x32xf32> to vector<16xf32>
    %24 = vector.shape_cast %23 : vector<16xf32> to vector<16x1xf32>
    %cst_28 = arith.constant 3.200000e+01 : f32
    %25 = vector.broadcast %cst_28 : f32 to vector<16x1xf32>
    %26 = arith.divf %24, %25 : vector<16x1xf32>
    %cst_29 = arith.constant 9.99999997E-7 : f32
    %27 = vector.broadcast %cst_29 : f32 to vector<16x1xf32>
    %28 = arith.addf %26, %27 : vector<16x1xf32>
    %29 = math.rsqrt %28 : vector<16x1xf32>
    %30 = vector.broadcast %29 : vector<16x1xf32> to vector<16x32xf32>
    %31 = arith.mulf %21, %30 : vector<16x32xf32>
    %32 = vector.broadcast %12 : vector<1x32xf32> to vector<16x32xf32>
    %33 = arith.mulf %31, %32 : vector<16x32xf32>
    %34 = vector.broadcast %13 : vector<1x32xf32> to vector<16x32xf32>
    %35 = arith.addf %33, %34 : vector<16x32xf32>
    %cst_30 = arith.constant dense<0.000000e+00> : vector<16x96xf32>
    %36 = tpu.matmul %35, %1, %cst_30 {dimension_numbers = #tpu.dot_dimension_numbers<[1], [0], [0], [1], [0, 0, 1, 1], [], []>} : vector<16x32xf32>, vector<32x96xf32>, vector<16x96xf32> -> vector<16x96xf32>
    %37 = vector.broadcast %8 : vector<1x96xf32> to vector<16x96xf32>
    %38 = arith.addf %36, %37 : vector<16x96xf32>
    %39 = vector.extract_strided_slice %38 {offsets = [0, 0], sizes = [16, 32], strides = [1, 1]} : vector<16x96xf32> to vector<16x32xf32>
    %40 = vector.extract_strided_slice %38 {offsets = [0, 32], sizes = [16, 32], strides = [1, 1]} : vector<16x96xf32> to vector<16x32xf32>
    %41 = vector.extract_strided_slice %38 {offsets = [0, 64], sizes = [16, 32], strides = [1, 1]} : vector<16x96xf32> to vector<16x32xf32>
    %42 = tpu.concatenate %40, %40, %40, %40 in 0 : vector<16x32xf32>, vector<16x32xf32>, vector<16x32xf32>, vector<16x32xf32> -> vector<64x32xf32>
    %43 = arith.mulf %42, %7 : vector<64x32xf32>
    %44 = tpu.concatenate %41, %41, %41, %41 in 0 : vector<16x32xf32>, vector<16x32xf32>, vector<16x32xf32>, vector<16x32xf32> -> vector<64x32xf32>
    %45 = arith.mulf %44, %7 : vector<64x32xf32>
    "tpu.trace_start"() <{level = 10 : i32, message = "qd,jd->qj"}> : () -> ()
    %cst_31 = arith.constant dense<0.000000e+00> : vector<16x64xf32>
    %46 = tpu.matmul %39, %43, %cst_31 {dimension_numbers = #tpu.dot_dimension_numbers<[1], [1], [0], [0], [0, 0, 1, 0], [], []>} : vector<16x32xf32>, vector<64x32xf32>, vector<16x64xf32> -> vector<16x64xf32>
    "tpu.trace_stop"() : () -> ()
    %cst_32 = arith.constant dense<0xFF800000> : vector<16xf32>
    %47 = vector.multi_reduction <maximumf>, %46, %cst_32 [1] : vector<16x64xf32> to vector<16xf32>
    %48 = vector.shape_cast %47 : vector<16xf32> to vector<16x1xf32>
    %49 = vector.broadcast %48 : vector<16x1xf32> to vector<16x64xf32>
    %50 = arith.subf %46, %49 : vector<16x64xf32>
    %51 = math.exp %50 : vector<16x64xf32>
    %52 = arith.mulf %51, %4 : vector<16x64xf32>
    %cst_33 = arith.constant dense<0.000000e+00> : vector<16x64xf32>
    %53 = tpu.matmul %52, %6, %cst_33 {dimension_numbers = #tpu.dot_dimension_numbers<[1], [0], [0], [1], [0, 0, 1, 1], [], []>} : vector<16x64xf32>, vector<64x64xf32>, vector<16x64xf32> -> vector<16x64xf32>
    %54 = arith.divf %52, %53 : vector<16x64xf32>
    %cst_34 = arith.constant dense<0.000000e+00> : vector<16x32xf32>
    %55 = tpu.matmul %54, %45, %cst_34 {dimension_numbers = #tpu.dot_dimension_numbers<[1], [0], [0], [1], [0, 0, 1, 1], [], []>} : vector<16x64xf32>, vector<64x32xf32>, vector<16x32xf32> -> vector<16x32xf32>
    %cst_35 = arith.constant dense<0.000000e+00> : vector<16x32xf32>
    %56 = tpu.matmul %55, %2, %cst_35 {dimension_numbers = #tpu.dot_dimension_numbers<[1], [0], [0], [1], [0, 0, 1, 1], [], []>} : vector<16x32xf32>, vector<32x32xf32>, vector<16x32xf32> -> vector<16x32xf32>
    %57 = vector.broadcast %9 : vector<1x32xf32> to vector<16x32xf32>
    %58 = arith.addf %56, %57 : vector<16x32xf32>
    %59 = arith.addf %0, %58 : vector<16x32xf32>
    %cst_36 = arith.constant dense<0.000000e+00> : vector<16xf32>
    %60 = vector.multi_reduction <add>, %59, %cst_36 [1] : vector<16x32xf32> to vector<16xf32>
    %61 = vector.shape_cast %60 : vector<16xf32> to vector<16x1xf32>
    %cst_37 = arith.constant 3.200000e+01 : f32
    %62 = vector.broadcast %cst_37 : f32 to vector<16x1xf32>
    %63 = arith.divf %61, %62 : vector<16x1xf32>
    %64 = vector.broadcast %63 : vector<16x1xf32> to vector<16x32xf32>
    %65 = arith.subf %59, %64 : vector<16x32xf32>
    %66 = arith.mulf %65, %65 : vector<16x32xf32>
    %cst_38 = arith.constant dense<0.000000e+00> : vector<16xf32>
    %67 = vector.multi_reduction <add>, %66, %cst_38 [1] : vector<16x32xf32> to vector<16xf32>
    %68 = vector.shape_cast %67 : vector<16xf32> to vector<16x1xf32>
    %cst_39 = arith.constant 3.200000e+01 : f32
    %69 = vector.broadcast %cst_39 : f32 to vector<16x1xf32>
    %70 = arith.divf %68, %69 : vector<16x1xf32>
    %cst_40 = arith.constant 9.99999997E-7 : f32
    %71 = vector.broadcast %cst_40 : f32 to vector<16x1xf32>
    %72 = arith.addf %70, %71 : vector<16x1xf32>
    %73 = math.rsqrt %72 : vector<16x1xf32>
    %74 = vector.broadcast %73 : vector<16x1xf32> to vector<16x32xf32>
    %75 = arith.mulf %65, %74 : vector<16x32xf32>
    %76 = vector.broadcast %14 : vector<1x32xf32> to vector<16x32xf32>
    %77 = arith.mulf %75, %76 : vector<16x32xf32>
    %78 = vector.broadcast %15 : vector<1x32xf32> to vector<16x32xf32>
    %79 = arith.addf %77, %78 : vector<16x32xf32>
    %cst_41 = arith.constant dense<0.000000e+00> : vector<16x64xf32>
    %80 = tpu.matmul %79, %3, %cst_41 {dimension_numbers = #tpu.dot_dimension_numbers<[1], [0], [0], [1], [0, 0, 1, 1], [], []>} : vector<16x32xf32>, vector<32x64xf32>, vector<16x64xf32> -> vector<16x64xf32>
    %81 = vector.broadcast %10 : vector<1x64xf32> to vector<16x64xf32>
    %82 = arith.addf %80, %81 : vector<16x64xf32>
    %cst_42 = arith.constant 5.000000e-01 : f32
    %83 = vector.broadcast %cst_42 : f32 to vector<16x64xf32>
    %84 = arith.mulf %83, %82 : vector<16x64xf32>
    %cst_43 = arith.constant 4.471500e-02 : f32
    %85 = vector.broadcast %cst_43 : f32 to vector<16x64xf32>
    %86 = arith.mulf %85, %82 : vector<16x64xf32>
    %87 = arith.mulf %86, %82 : vector<16x64xf32>
    %88 = arith.mulf %87, %82 : vector<16x64xf32>
    %89 = arith.addf %82, %88 : vector<16x64xf32>
    %cst_44 = arith.constant 0.797884583 : f32
    %90 = vector.broadcast %cst_44 : f32 to vector<16x64xf32>
    %91 = arith.mulf %90, %89 : vector<16x64xf32>
    %92 = math.tanh %91 : vector<16x64xf32>
    %cst_45 = arith.constant 1.000000e+00 : f32
    %93 = vector.broadcast %cst_45 : f32 to vector<16x64xf32>
    %94 = arith.addf %93, %92 : vector<16x64xf32>
    %95 = arith.mulf %84, %94 : vector<16x64xf32>
    %cst_46 = arith.constant dense<0.000000e+00> : vector<16x32xf32>
    %96 = tpu.matmul %95, %5, %cst_46 {dimension_numbers = #tpu.dot_dimension_numbers<[1], [0], [0], [1], [0, 0, 1, 1], [], []>} : vector<16x64xf32>, vector<64x32xf32>, vector<16x32xf32> -> vector<16x32xf32>
    %97 = vector.broadcast %11 : vector<1x32xf32> to vector<16x32xf32>
    %98 = arith.addf %96, %97 : vector<16x32xf32>
    %99 = arith.addf %59, %98 : vector<16x32xf32>
    %c0_47 = arith.constant 0 : index
    %c0_48 = arith.constant 0 : index
    %100 = vector.load %arg4[%c0_47, %c0_48] : memref<16x32xf32, #tpu.memory_space<vmem>>, vector<16x32xf32>
    tpu.vector_store %arg4[%c0_47, %c0_48], %99 {strides = array<i32>} : memref<16x32xf32, #tpu.memory_space<vmem>>, vector<16x32xf32>,
    return
  }
  func.func @transform_0(%arg0: i32) -> (i32, i32) {
    %c0_i32 = arith.constant 0 : i32
    %c0_i32_0 = arith.constant 0 : i32
    %c0_i32_1 = arith.constant 0 : i32
    return %c0_i32, %c0_i32_0 : i32, i32
  }
  func.func @transform_1(%arg0: i32) -> (i32, i32) {
    %c0_i32 = arith.constant 0 : i32
    %c0_i32_0 = arith.constant 0 : i32
    %c0_i32_1 = arith.constant 0 : i32
    return %c0_i32, %c0_i32_0 : i32, i32
  }
  func.func @transform_2(%arg0: i32) -> (i32, i32) {
    %c0_i32 = arith.constant 0 : i32
    %c0_i32_0 = arith.constant 0 : i32
    %c0_i32_1 = arith.constant 0 : i32
    return %c0_i32, %c0_i32_0 : i32, i32
  }
  func.func @transform_3(%arg0: i32) -> (i32, i32) {
    %c0_i32 = arith.constant 0 : i32
    %c0_i32_0 = arith.constant 0 : i32
    %c0_i32_1 = arith.constant 0 : i32
    return %c0_i32, %c0_i32_0 : i32, i32
  }
}

</mosaic_0001>

<llo_original>
// kernel: siglip_encoder_layer.1
$region0: #{siglip_encoder_layer.1}
  #allocation0 [shape = 'u32[]', space=smem, size = 0x4, offset = 0x4, fixed_abs, tag = 'smem constant byte address 0x4 - core index']
  #allocation1 [shape = 'u32[144,128]{1,0:T(1,128)}', space=vmem, size = 0x12000, scoped, tag = 'internal scratch']
  %s0 = inlined_call_operand.vmem [shape: f32[16,32], index: 0, kind: input, shape index: {}]
  %s1 = inlined_call_operand.vmem [shape: f32[128,128], index: 1, kind: input, shape index: {}]
  %s2 = inlined_call_operand.vmem [shape: f32[8,128], index: 2, kind: input, shape index: {}]
  %s3 = inlined_call_operand.hbm [shape: f32[16,32], index: 3, kind: output, shape index: {}]
  %s4 = sld [smem:[#allocation0]]
  $region22: #{siglip_encoder_layer.1} parent=0
    _
  %s6 = ssub.s32 1, %s4
  %s7 = scalar_select 0, %s6, %s4
  $region1: #{siglip_encoder_layer.1} parent=0
    #allocation2 [shape = 'u8[8192]{0}', space=vmem, size = 0x2000, scoped, tag = 'output window, operand 0, single buffered']
    #allocation3 [shape = 's32[1]{0}', space=sflag, size = 0x4, scoped, tag = 'scoped memory for siglip_encoder_layer.1']
    %8 = vsyncpa [#allocation3], 0
    // Predicated region
    $region2: #{siglip_encoder_layer.1} parent=1 // pred_check
      _
    $region3: #{siglip_encoder_layer.1} parent=1 // pred_check_branch
      %10 = sbr.rel (0) target = $region5
    $region4: #{siglip_encoder_layer.1} parent=1 // pred_region
      _
    $region5: #{siglip_encoder_layer.1} parent=1 // pred_fallthru
      _
    // Predicated region
    $region6: #{siglip_encoder_layer.1} parent=1 // pred_check
      _
    $region7: #{siglip_encoder_layer.1} parent=1 // pred_check_branch
      %12 = sbr.rel (0) target = $region9
    $region8: #{siglip_encoder_layer.1} parent=1 // pred_region
      _
    $region9: #{siglip_encoder_layer.1} parent=1 // pred_fallthru
      _
    // Predicated region
    $region10: #{siglip_encoder_layer.1} parent=1 // pred_check
      _
    $region11: #{siglip_encoder_layer.1} parent=1 // pred_check_branch
      %14 = sbr.rel (0) target = $region13
    $region12: #{siglip_encoder_layer.1} parent=1 // pred_region
      _
    $region13: #{siglip_encoder_layer.1} parent=1 // pred_fallthru
      _
    %v15 = vld [vmem:[%s0] sm:$0xff]
    %v16 = vld [vmem:[%s0 + $0x8] sm:$0xff]
    %v17 = vld [vmem:[%s1] sm:$0xff]
    %v18 = vld [vmem:[%s1 + $0x8] sm:$0xff]
    %v19 = vld [vmem:[%s1 + $0x10] sm:$0xff]
    %v20 = vld [vmem:[%s1 + $0x18] sm:$0xff]
    %v21 = vld [vmem:[%s1 + $0x20] sm:$0xff]
    %v22 = vld [vmem:[%s1 + $0x28] sm:$0xff]
    %v23 = vld [vmem:[%s1 + $0x30] sm:$0xff]
    %v24 = vld [vmem:[%s1 + $0x38] sm:$0xff]
    %v25 = vld [vmem:[%s1 + $0x40] sm:$0xff]
    %v26 = vld [vmem:[%s1 + $0x48] sm:$0xff]
    %v27 = vld [vmem:[%s1 + $0x50] sm:$0xff]
    %v28 = vld [vmem:[%s1 + $0x58] sm:$0xff]
    %v29 = vld [vmem:[%s1 + $0x60] sm:$0xff]
    %v30 = vld [vmem:[%s1 + $0x68] sm:$0xff]
    %v31 = vld [vmem:[%s1 + $0x70] sm:$0xff]
    %v32 = vld [vmem:[%s1 + $0x78] sm:$0xff]
    %v33 = vld [vmem:[%s2] sm:$0x1]
    %v34 = vld [vmem:[%s2 + $0x1] sm:$0x1]
    %v35 = vld [vmem:[%s2 + $0x2] sm:$0x1]
    %vm36 = vcmask 261120
    %v37 = vsel %vm36, %v15, 0.0
    %38 = vadd.xlane.f32.xlu0 %v37
    %v39 = vpop.xlane.xlu0 %38
    %v40 = vsel %vm36, %v16, 0.0
    %41 = vadd.xlane.f32.xlu0 %v40
    %v42 = vpop.xlane.xlu0 %41
    %v43 = vrcp.pop 32.0
    %v44 = vmul.f32 %v39, %v43
    %v45 = vmul.f32 %v42, %v43
    %v46 = vsub.f32 %v15, %v44
    %v47 = vsub.f32 %v16, %v45
    %v48 = vmul.f32 %v46, %v46
    %v49 = vmul.f32 %v47, %v47
    %v50 = vsel %vm36, %v48, 0.0
    %51 = vadd.xlane.f32.xlu0 %v50
    %v52 = vpop.xlane.xlu0 %51
    %v53 = vsel %vm36, %v49, 0.0
    %54 = vadd.xlane.f32.xlu0 %v53
    %v55 = vpop.xlane.xlu0 %54
    %v56 = vmul.f32 %v52, %v43
    %v57 = vmul.f32 %v55, %v43
    %v58 = vadd.f32 %v56, 1e-06
    %v59 = vadd.f32 %v57, 1e-06
    %v60 = vrsqrt.pop %v58
    %v61 = vrsqrt.pop %v59
    %v62 = vmul.f32 %v46, %v60
    %v63 = vmul.f32 %v47, %v61
    %v64 = vlaneseq
    %v65 = vshrl.u32 %v64, 7
    %v66 = vsub.s32 0, %v65
    %v67 = vrot.slane %v35, %v66
    %v68 = vmul.f32 %v62, %v67
    %v69 = vmul.f32 %v63, %v67
    %71 = vrot.lane.b32.xlu0 %v67, 96
    %v72 = vpop.permute.xlu0 %71
    %v74 = vadd.f32 %v68, %v72
    %v75 = vadd.f32 %v69, %v72
    %v76 = vlaneseq
    %v77 = vshrl.u32 %v76, 7
    %v78 = vsub.s32 0, %v77
    %v79 = vrot.slane %v33, %v78
    %v81 = vsel %vm36, %v74, 0
    %v84 = vsel %vm36, %v75, 0
    %86 = vmatprep.subr.mxu0 0.0
    %87 = vmatpush1.msra.mxu0 0.0
    %88 = vmatprep.subr.mxu0 0.0
    %89 = vmatpush1.msra.mxu0 0.0
    %90 = vmatprep.subr.mxu0 0.0
    %91 = vmatpush1.msra.mxu0 0.0
    %92 = vmatprep.subr.mxu0 0.0
    %93 = vmatpush1.msra.mxu0 0.0
    %94 = vmatprep.subr.mxu0 0.0
    %95 = vmatpush1.msra.mxu0 0.0
    %96 = vmatprep.subr.mxu0 0.0
    %97 = vmatpush1.msra.mxu0 0.0
    %98 = vmatprep.subr.mxu0 0.0
    %99 = vmatpush1.msra.mxu0 0.0
    %100 = vmatprep.subr.mxu0 0.0
    %101 = vmatpush1.msra.mxu0 0.0
    %102 = vmatprep.subr.mxu0 0.0
    %103 = vmatpush1.msra.mxu0 0.0
    %104 = vmatprep.subr.mxu0 0.0
    %105 = vmatpush1.msra.mxu0 0.0
    %106 = vmatprep.subr.mxu0 0.0
    %107 = vmatpush1.msra.mxu0 0.0
    %108 = vmatprep.subr.mxu0 0.0
    %109 = vmatpush1.msra.mxu0 0.0
    %110 = vmatprep.subr.mxu0 0.0
    %111 = vmatpush1.msra.mxu0 %v20
    %112 = vmatprep.subr.mxu0 0.0
    %113 = vmatpush1.msra.mxu0 %v19
    %114 = vmatprep.subr.mxu0 0.0
    %115 = vmatpush1.msra.mxu0 %v18
    %116 = vmatprep.subr.mxu0 0.0
    %117 = vmatpush1.msra.mxu0 %v17
    %118 = vmatprep.subr.mxu0 0.0
    %119 = vmatpush2.msra.mxu0 0.0
    %120 = vmatprep.subr.mxu0 0.0
    %121 = vmatpush2.msra.mxu0 0.0
    %122 = vmatprep.subr.mxu0 0.0
    %123 = vmatpush2.msra.mxu0 0.0
    %124 = vmatprep.subr.mxu0 0.0
    %125 = vmatpush2.msra.mxu0 0.0
    %126 = vmatprep.subr.mxu0 0.0
    %127 = vmatpush2.msra.mxu0 0.0
    %128 = vmatprep.subr.mxu0 0.0
    %129 = vmatpush2.msra.mxu0 0.0
    %130 = vmatprep.subr.mxu0 0.0
    %131 = vmatpush2.msra.mxu0 0.0
    %132 = vmatprep.subr.mxu0 0.0
    %133 = vmatpush2.msra.mxu0 0.0
    %134 = vmatprep.subr.mxu0 0.0
    %135 = vmatpush2.msra.mxu0 0.0
    %136 = vmatprep.subr.mxu0 0.0
    %137 = vmatpush2.msra.mxu0 0.0
    %138 = vmatprep.subr.mxu0 0.0
    %139 = vmatpush2.msra.mxu0 0.0
    %140 = vmatprep.subr.mxu0 0.0
    %141 = vmatpush2.msra.mxu0 0.0
    %142 = vmatprep.subr.mxu0 0.0
    %143 = vmatpush2.msra.mxu0 0.0
    %144 = vmatprep.subr.mxu0 0.0
    %145 = vmatpush2.msra.mxu0 0.0
    %146 = vmatprep.subr.mxu0 0.0
    %147 = vmatpush2.msra.mxu0 0.0
    %148 = vmatprep.subr.mxu0 0.0
    %149 = vmatpush2.msra.mxu0 0.0
    %150 = vmatprep.mubr.f32.mxu0 0.0
    %151 = vmatmul.mubr.f32.gmra.mxu0 %v81
    %v152 = vpop.f32.mrf.mxu0
    %v153 = vadd.f32 %v79, %v152
    %v154 = vpop.f32.mrf.mxu0
    %155 = vmatprep.mubr.f32.mxu0 0.0
    %156 = vmatmul.mubr.f32.gmra.mxu0 %v84
    %v157 = vpop.f32.mrf.mxu0
    %v158 = vadd.f32 %v79, %v157
    %v159 = vpop.f32.mrf.mxu0
    %160 = vdwg.mxu0
    %169 = vrot.lane.b32.xlu0 %v25, 64
    %v170 = vpop.permute.xlu0 %169
    %171 = vrot.lane.b32.xlu0 %v26, 64
    %v172 = vpop.permute.xlu0 %171
    %173 = vrot.lane.b32.xlu0 %v27, 64
    %v174 = vpop.permute.xlu0 %173
    %175 = vrot.lane.b32.xlu0 %v28, 64
    %v176 = vpop.permute.xlu0 %175
    %177 = vrot.lane.b32.xlu0 %v29, 64
    %v178 = vpop.permute.xlu0 %177
    %179 = vrot.lane.b32.xlu0 %v30, 64
    %v180 = vpop.permute.xlu0 %179
    %181 = vrot.lane.b32.xlu0 %v31, 64
    %v182 = vpop.permute.xlu0 %181
    %183 = vrot.lane.b32.xlu0 %v32, 64
    %v184 = vpop.permute.xlu0 %183
    %v193 = vmul.f32 %v153, %v170
    %v194 = vmul.f32 %v158, %v172
    %v195 = vmul.f32 %v153, %v174
    %v196 = vmul.f32 %v158, %v176
    %v197 = vmul.f32 %v153, %v178
    %v198 = vmul.f32 %v158, %v180
    %v199 = vmul.f32 %v153, %v182
    %v200 = vmul.f32 %v158, %v184
    %201 = vrot.lane.b32.xlu0 %v25, 96
    %v202 = vpop.permute.xlu0 %201
    %203 = vrot.lane.b32.xlu0 %v26, 96
    %v204 = vpop.permute.xlu0 %203
    %205 = vrot.lane.b32.xlu0 %v27, 96
    %v206 = vpop.permute.xlu0 %205
    %207 = vrot.lane.b32.xlu0 %v28, 96
    %v208 = vpop.permute.xlu0 %207
    %209 = vrot.lane.b32.xlu0 %v29, 96
    %v210 = vpop.permute.xlu0 %209
    %211 = vrot.lane.b32.xlu0 %v30, 96
    %v212 = vpop.permute.xlu0 %211
    %213 = vrot.lane.b32.xlu0 %v31, 96
    %v214 = vpop.permute.xlu0 %213
    %215 = vrot.lane.b32.xlu0 %v32, 96
    %v216 = vpop.permute.xlu0 %215
    %v225 = vmul.f32 %v153, %v202
    %v226 = vmul.f32 %v158, %v204
    %v227 = vmul.f32 %v153, %v206
    %v228 = vmul.f32 %v158, %v208
    %v229 = vmul.f32 %v153, %v210
    %v230 = vmul.f32 %v158, %v212
    %v231 = vmul.f32 %v153, %v214
    %v232 = vmul.f32 %v158, %v216
    %241 = vrot.lane.b32.xlu0 %v193, 96
    %v242 = vpop.permute.xlu0 %241
    %243 = vrot.lane.b32.xlu0 %v194, 96
    %v244 = vpop.permute.xlu0 %243
    %245 = vrot.lane.b32.xlu0 %v195, 96
    %v246 = vpop.permute.xlu0 %245
    %247 = vrot.lane.b32.xlu0 %v196, 96
    %v248 = vpop.permute.xlu0 %247
    %249 = vrot.lane.b32.xlu0 %v197, 96
    %v250 = vpop.permute.xlu0 %249
    %251 = vrot.lane.b32.xlu0 %v198, 96
    %v252 = vpop.permute.xlu0 %251
    %253 = vrot.lane.b32.xlu0 %v199, 96
    %v254 = vpop.permute.xlu0 %253
    %255 = vrot.lane.b32.xlu0 %v200, 96
    %v256 = vpop.permute.xlu0 %255
    %v258 = vsel %vm36, %v153, 0
    %v261 = vsel %vm36, %v158, 0
    %v263 = vsel %vm36, %v242, 0
    %v265 = vsel %vm36, %v244, 0
    %v267 = vsel %vm36, %v246, 0
    %v269 = vsel %vm36, %v248, 0
    %v271 = vsel %vm36, %v250, 0
    %v273 = vsel %vm36, %v252, 0
    %v275 = vsel %vm36, %v254, 0
    %v277 = vsel %vm36, %v256, 0
    %279 = vmatprep.subr.mxu0 0.0
    %280 = vmatpush1.xpose.msra.mxu0 0.0
    %281 = vmatprep.subr.mxu0 0.0
    %282 = vmatpush1.xpose.msra.mxu0 0.0
    %283 = vmatprep.subr.mxu0 0.0
    %284 = vmatpush1.xpose.msra.mxu0 0.0
    %285 = vmatprep.subr.mxu0 0.0
    %286 = vmatpush1.xpose.msra.mxu0 0.0
    %287 = vmatprep.subr.mxu0 0.0
    %288 = vmatpush1.xpose.msra.mxu0 0.0
    %289 = vmatprep.subr.mxu0 0.0
    %290 = vmatpush1.xpose.msra.mxu0 0.0
    %291 = vmatprep.subr.mxu0 0.0
    %292 = vmatpush1.xpose.msra.mxu0 0.0
    %293 = vmatprep.subr.mxu0 0.0
    %294 = vmatpush1.xpose.msra.mxu0 0.0
    %295 = vmatprep.subr.mxu0 0.0
    %296 = vmatpush1.xpose.msra.mxu0 %v277
    %297 = vmatprep.subr.mxu0 0.0
    %298 = vmatpush1.xpose.msra.mxu0 %v275
    %299 = vmatprep.subr.mxu0 0.0
    %300 = vmatpush1.xpose.msra.mxu0 %v273
    %301 = vmatprep.subr.mxu0 0.0
    %302 = vmatpush1.xpose.msra.mxu0 %v271
    %303 = vmatprep.subr.mxu0 0.0
    %304 = vmatpush1.xpose.msra.mxu0 %v269
    %305 = vmatprep.subr.mxu0 0.0
    %306 = vmatpush1.xpose.msra.mxu0 %v267
    %307 = vmatprep.subr.mxu0 0.0
    %308 = vmatpush1.xpose.msra.mxu0 %v265
    %309 = vmatprep.subr.mxu0 0.0
    %310 = vmatpush1.xpose.msra.mxu0 %v263
    %311 = vmatprep.subr.mxu0 0.0
    %312 = vmatpush2.xpose.msra.mxu0 0.0
    %313 = vmatprep.subr.mxu0 0.0
    %314 = vmatpush2.xpose.msra.mxu0 0.0
    %315 = vmatprep.subr.mxu0 0.0
    %316 = vmatpush2.xpose.msra.mxu0 0.0
    %317 = vmatprep.subr.mxu0 0.0
    %318 = vmatpush2.xpose.msra.mxu0 0.0
    %319 = vmatprep.subr.mxu0 0.0
    %320 = vmatpush2.xpose.msra.mxu0 0.0
    %321 = vmatprep.subr.mxu0 0.0
    %322 = vmatpush2.xpose.msra.mxu0 0.0
    %323 = vmatprep.subr.mxu0 0.0
    %324 = vmatpush2.xpose.msra.mxu0 0.0
    %325 = vmatprep.subr.mxu0 0.0
    %326 = vmatpush2.xpose.msra.mxu0 0.0
    %327 = vmatprep.subr.mxu0 0.0
    %328 = vmatpush2.xpose.msra.mxu0 0.0
    %329 = vmatprep.subr.mxu0 0.0
    %330 = vmatpush2.xpose.msra.mxu0 0.0
    %331 = vmatprep.subr.mxu0 0.0
    %332 = vmatpush2.xpose.msra.mxu0 0.0
    %333 = vmatprep.subr.mxu0 0.0
    %334 = vmatpush2.xpose.msra.mxu0 0.0
    %335 = vmatprep.subr.mxu0 0.0
    %336 = vmatpush2.xpose.msra.mxu0 0.0
    %337 = vmatprep.subr.mxu0 0.0
    %338 = vmatpush2.xpose.msra.mxu0 0.0
    %339 = vmatprep.subr.mxu0 0.0
    %340 = vmatpush2.xpose.msra.mxu0 0.0
    %341 = vmatprep.subr.mxu0 0.0
    %342 = vmatpush2.xpose.msra.mxu0 0.0
    %343 = vmatprep.mubr.f32.mxu0 0.0
    %344 = vmatmul.mubr.f32.gmra.mxu0 %v258
    %v345 = vpop.f32.mrf.mxu0
    %v346 = vadd.f32 0.0, %v345
    %v347 = vpop.f32.mrf.mxu0
    %348 = vmatprep.mubr.f32.mxu0 0.0
    %349 = vmatmul.mubr.f32.gmra.mxu0 %v261
    %v350 = vpop.f32.mrf.mxu0
    %v351 = vadd.f32 0.0, %v350
    %v352 = vpop.f32.mrf.mxu0
    %353 = vdwg.mxu0
    %vm354 = vcmask 523264
    %v355 = vsel %vm354, %v346, -inf
    %356 = vmax.xlane.f32.xlu0 %v355
    %v357 = vpop.xlane.xlu0 %356
    %v358 = vsel %vm354, %v351, -inf
    %359 = vmax.xlane.f32.xlu0 %v358
    %v360 = vpop.xlane.xlu0 %359
    %v361 = vsub.f32 %v346, %v357
    %v362 = vsub.f32 %v351, %v360
    %v363 = vmul.f32 %v361, 1.442695
    %v364 = vpow.pop %v363
    %v365 = vmul.f32 %v362, 1.442695
    %v366 = vpow.pop %v365
    %369 = vrot.lane.b32.xlu0 %v21, 64
    %v370 = vpop.permute.xlu0 %369
    %371 = vrot.lane.b32.xlu0 %v22, 64
    %v372 = vpop.permute.xlu0 %371
    %v375 = vmul.f32 %v364, %v370
    %v376 = vmul.f32 %v366, %v372
    %v378 = vsel %vm354, %v375, 0
    %v381 = vsel %vm354, %v376, 0
    %383 = vmatprep.subr.mxu0 0.0
    %384 = vmatpush1.msra.mxu0 0.0
    %385 = vmatprep.subr.mxu0 0.0
    %386 = vmatpush1.msra.mxu0 0.0
    %387 = vmatprep.subr.mxu0 0.0
    %388 = vmatpush1.msra.mxu0 0.0
    %389 = vmatprep.subr.mxu0 0.0
    %390 = vmatpush1.msra.mxu0 0.0
    %391 = vmatprep.subr.mxu0 0.0
    %392 = vmatpush1.msra.mxu0 0.0
    %393 = vmatprep.subr.mxu0 0.0
    %394 = vmatpush1.msra.mxu0 0.0
    %395 = vmatprep.subr.mxu0 0.0
    %396 = vmatpush1.msra.mxu0 0.0
    %397 = vmatprep.subr.mxu0 0.0
    %398 = vmatpush1.msra.mxu0 0.0
    %399 = vmatprep.subr.mxu0 0.0
    %400 = vmatpush1.msra.mxu0 %v216
    %401 = vmatprep.subr.mxu0 0.0
    %402 = vmatpush1.msra.mxu0 %v214
    %403 = vmatprep.subr.mxu0 0.0
    %404 = vmatpush1.msra.mxu0 %v212
    %405 = vmatprep.subr.mxu0 0.0
    %406 = vmatpush1.msra.mxu0 %v210
    %407 = vmatprep.subr.mxu0 0.0
    %408 = vmatpush1.msra.mxu0 %v208
    %409 = vmatprep.subr.mxu0 0.0
    %410 = vmatpush1.msra.mxu0 %v206
    %411 = vmatprep.subr.mxu0 0.0
    %412 = vmatpush1.msra.mxu0 %v204
    %413 = vmatprep.subr.mxu0 0.0
    %414 = vmatpush1.msra.mxu0 %v202
    %415 = vmatprep.subr.mxu0 0.0
    %416 = vmatpush2.msra.mxu0 0.0
    %417 = vmatprep.subr.mxu0 0.0
    %418 = vmatpush2.msra.mxu0 0.0
    %419 = vmatprep.subr.mxu0 0.0
    %420 = vmatpush2.msra.mxu0 0.0
    %421 = vmatprep.subr.mxu0 0.0
    %422 = vmatpush2.msra.mxu0 0.0
    %423 = vmatprep.subr.mxu0 0.0
    %424 = vmatpush2.msra.mxu0 0.0
    %425 = vmatprep.subr.mxu0 0.0
    %426 = vmatpush2.msra.mxu0 0.0
    %427 = vmatprep.subr.mxu0 0.0
    %428 = vmatpush2.msra.mxu0 0.0
    %429 = vmatprep.subr.mxu0 0.0
    %430 = vmatpush2.msra.mxu0 0.0
    %431 = vmatprep.subr.mxu0 0.0
    %432 = vmatpush2.msra.mxu0 0.0
    %433 = vmatprep.subr.mxu0 0.0
    %434 = vmatpush2.msra.mxu0 0.0
    %435 = vmatprep.subr.mxu0 0.0
    %436 = vmatpush2.msra.mxu0 0.0
    %437 = vmatprep.subr.mxu0 0.0
    %438 = vmatpush2.msra.mxu0 0.0
    %439 = vmatprep.subr.mxu0 0.0
    %440 = vmatpush2.msra.mxu0 0.0
    %441 = vmatprep.subr.mxu0 0.0
    %442 = vmatpush2.msra.mxu0 0.0
    %443 = vmatprep.subr.mxu0 0.0
    %444 = vmatpush2.msra.mxu0 0.0
    %445 = vmatprep.subr.mxu0 0.0
    %446 = vmatpush2.msra.mxu0 0.0
    %447 = vmatprep.mubr.f32.mxu0 0.0
    %448 = vmatmul.mubr.f32.gmra.mxu0 %v378
    %v449 = vpop.f32.mrf.mxu0
    %v450 = vadd.f32 0.0, %v449
    %v451 = vpop.f32.mrf.mxu0
    %452 = vmatprep.mubr.f32.mxu0 0.0
    %453 = vmatmul.mubr.f32.gmra.mxu0 %v381
    %v454 = vpop.f32.mrf.mxu0
    %v455 = vadd.f32 0.0, %v454
    %v456 = vpop.f32.mrf.mxu0
    %457 = vdwg.mxu0
    %v458 = vrcp.pop %v450
    %v459 = vmul.f32 %v375, %v458
    %v460 = vrcp.pop %v455
    %v461 = vmul.f32 %v376, %v460
    %470 = vrot.lane.b32.xlu0 %v225, 64
    %v471 = vpop.permute.xlu0 %470
    %472 = vrot.lane.b32.xlu0 %v226, 64
    %v473 = vpop.permute.xlu0 %472
    %474 = vrot.lane.b32.xlu0 %v227, 64
    %v475 = vpop.permute.xlu0 %474
    %476 = vrot.lane.b32.xlu0 %v228, 64
    %v477 = vpop.permute.xlu0 %476
    %478 = vrot.lane.b32.xlu0 %v229, 64
    %v479 = vpop.permute.xlu0 %478
    %480 = vrot.lane.b32.xlu0 %v230, 64
    %v481 = vpop.permute.xlu0 %480
    %482 = vrot.lane.b32.xlu0 %v231, 64
    %v483 = vpop.permute.xlu0 %482
    %484 = vrot.lane.b32.xlu0 %v232, 64
    %v485 = vpop.permute.xlu0 %484
    %v495 = vsel %vm354, %v459, 0
    %v498 = vsel %vm354, %v461, 0
    %500 = vmatprep.subr.mxu0 0.0
    %501 = vmatpush1.msra.mxu0 0.0
    %502 = vmatprep.subr.mxu0 0.0
    %503 = vmatpush1.msra.mxu0 0.0
    %504 = vmatprep.subr.mxu0 0.0
    %505 = vmatpush1.msra.mxu0 0.0
    %506 = vmatprep.subr.mxu0 0.0
    %507 = vmatpush1.msra.mxu0 0.0
    %508 = vmatprep.subr.mxu0 0.0
    %509 = vmatpush1.msra.mxu0 0.0
    %510 = vmatprep.subr.mxu0 0.0
    %511 = vmatpush1.msra.mxu0 0.0
    %512 = vmatprep.subr.mxu0 0.0
    %513 = vmatpush1.msra.mxu0 0.0
    %514 = vmatprep.subr.mxu0 0.0
    %515 = vmatpush1.msra.mxu0 0.0
    %516 = vmatprep.subr.mxu0 0.0
    %517 = vmatpush1.msra.mxu0 %v485
    %518 = vmatprep.subr.mxu0 0.0
    %519 = vmatpush1.msra.mxu0 %v483
    %520 = vmatprep.subr.mxu0 0.0
    %521 = vmatpush1.msra.mxu0 %v481
    %522 = vmatprep.subr.mxu0 0.0
    %523 = vmatpush1.msra.mxu0 %v479
    %524 = vmatprep.subr.mxu0 0.0
    %525 = vmatpush1.msra.mxu0 %v477
    %526 = vmatprep.subr.mxu0 0.0
    %527 = vmatpush1.msra.mxu0 %v475
    %528 = vmatprep.subr.mxu0 0.0
    %529 = vmatpush1.msra.mxu0 %v473
    %530 = vmatprep.subr.mxu0 0.0
    %531 = vmatpush1.msra.mxu0 %v471
    %532 = vmatprep.subr.mxu0 0.0
    %533 = vmatpush2.msra.mxu0 0.0
    %534 = vmatprep.subr.mxu0 0.0
    %535 = vmatpush2.msra.mxu0 0.0
    %536 = vmatprep.subr.mxu0 0.0
    %537 = vmatpush2.msra.mxu0 0.0
    %538 = vmatprep.subr.mxu0 0.0
    %539 = vmatpush2.msra.mxu0 0.0
    %540 = vmatprep.subr.mxu0 0.0
    %541 = vmatpush2.msra.mxu0 0.0
    %542 = vmatprep.subr.mxu0 0.0
    %543 = vmatpush2.msra.mxu0 0.0
    %544 = vmatprep.subr.mxu0 0.0
    %545 = vmatpush2.msra.mxu0 0.0
    %546 = vmatprep.subr.mxu0 0.0
    %547 = vmatpush2.msra.mxu0 0.0
    %548 = vmatprep.subr.mxu0 0.0
    %549 = vmatpush2.msra.mxu0 0.0
    %550 = vmatprep.subr.mxu0 0.0
    %551 = vmatpush2.msra.mxu0 0.0
    %552 = vmatprep.subr.mxu0 0.0
    %553 = vmatpush2.msra.mxu0 0.0
    %554 = vmatprep.subr.mxu0 0.0
    %555 = vmatpush2.msra.mxu0 0.0
    %556 = vmatprep.subr.mxu0 0.0
    %557 = vmatpush2.msra.mxu0 0.0
    %558 = vmatprep.subr.mxu0 0.0
    %559 = vmatpush2.msra.mxu0 0.0
    %560 = vmatprep.subr.mxu0 0.0
    %561 = vmatpush2.msra.mxu0 0.0
    %562 = vmatprep.subr.mxu0 0.0
    %563 = vmatpush2.msra.mxu0 0.0
    %564 = vmatprep.mubr.f32.mxu0 0.0
    %565 = vmatmul.mubr.f32.gmra.mxu0 %v495
    %v566 = vpop.f32.mrf.mxu0
    %v567 = vadd.f32 0.0, %v566
    %v568 = vpop.f32.mrf.mxu0
    %569 = vmatprep.mubr.f32.mxu0 0.0
    %570 = vmatmul.mubr.f32.gmra.mxu0 %v498
    %v571 = vpop.f32.mrf.mxu0
    %v572 = vadd.f32 0.0, %v571
    %v573 = vpop.f32.mrf.mxu0
    %574 = vdwg.mxu0
    %579 = vrot.lane.b32.xlu0 %v17, 32
    %v580 = vpop.permute.xlu0 %579
    %581 = vrot.lane.b32.xlu0 %v18, 32
    %v582 = vpop.permute.xlu0 %581
    %583 = vrot.lane.b32.xlu0 %v19, 32
    %v584 = vpop.permute.xlu0 %583
    %585 = vrot.lane.b32.xlu0 %v20, 32
    %v586 = vpop.permute.xlu0 %585
    %592 = vrot.lane.b32.xlu0 %v79, 32
    %v593 = vpop.permute.xlu0 %592
    %v596 = vsel %vm36, %v567, 0
    %v599 = vsel %vm36, %v572, 0
    %601 = vmatprep.subr.mxu0 0.0
    %602 = vmatpush1.msra.mxu0 0.0
    %603 = vmatprep.subr.mxu0 0.0
    %604 = vmatpush1.msra.mxu0 0.0
    %605 = vmatprep.subr.mxu0 0.0
    %606 = vmatpush1.msra.mxu0 0.0
    %607 = vmatprep.subr.mxu0 0.0
    %608 = vmatpush1.msra.mxu0 0.0
    %609 = vmatprep.subr.mxu0 0.0
    %610 = vmatpush1.msra.mxu0 0.0
    %611 = vmatprep.subr.mxu0 0.0
    %612 = vmatpush1.msra.mxu0 0.0
    %613 = vmatprep.subr.mxu0 0.0
    %614 = vmatpush1.msra.mxu0 0.0
    %615 = vmatprep.subr.mxu0 0.0
    %616 = vmatpush1.msra.mxu0 0.0
    %617 = vmatprep.subr.mxu0 0.0
    %618 = vmatpush1.msra.mxu0 0.0
    %619 = vmatprep.subr.mxu0 0.0
    %620 = vmatpush1.msra.mxu0 0.0
    %621 = vmatprep.subr.mxu0 0.0
    %622 = vmatpush1.msra.mxu0 0.0
    %623 = vmatprep.subr.mxu0 0.0
    %624 = vmatpush1.msra.mxu0 0.0
    %625 = vmatprep.subr.mxu0 0.0
    %626 = vmatpush1.msra.mxu0 %v586
    %627 = vmatprep.subr.mxu0 0.0
    %628 = vmatpush1.msra.mxu0 %v584
    %629 = vmatprep.subr.mxu0 0.0
    %630 = vmatpush1.msra.mxu0 %v582
    %631 = vmatprep.subr.mxu0 0.0
    %632 = vmatpush1.msra.mxu0 %v580
    %633 = vmatprep.subr.mxu0 0.0
    %634 = vmatpush2.msra.mxu0 0.0
    %635 = vmatprep.subr.mxu0 0.0
    %636 = vmatpush2.msra.mxu0 0.0
    %637 = vmatprep.subr.mxu0 0.0
    %638 = vmatpush2.msra.mxu0 0.0
    %639 = vmatprep.subr.mxu0 0.0
    %640 = vmatpush2.msra.mxu0 0.0
    %641 = vmatprep.subr.mxu0 0.0
    %642 = vmatpush2.msra.mxu0 0.0
    %643 = vmatprep.subr.mxu0 0.0
    %644 = vmatpush2.msra.mxu0 0.0
    %645 = vmatprep.subr.mxu0 0.0
    %646 = vmatpush2.msra.mxu0 0.0
    %647 = vmatprep.subr.mxu0 0.0
    %648 = vmatpush2.msra.mxu0 0.0
    %649 = vmatprep.subr.mxu0 0.0
    %650 = vmatpush2.msra.mxu0 0.0
    %651 = vmatprep.subr.mxu0 0.0
    %652 = vmatpush2.msra.mxu0 0.0
    %653 = vmatprep.subr.mxu0 0.0
    %654 = vmatpush2.msra.mxu0 0.0
    %655 = vmatprep.subr.mxu0 0.0
    %656 = vmatpush2.msra.mxu0 0.0
    %657 = vmatprep.subr.mxu0 0.0
    %658 = vmatpush2.msra.mxu0 0.0
    %659 = vmatprep.subr.mxu0 0.0
    %660 = vmatpush2.msra.mxu0 0.0
    %661 = vmatprep.subr.mxu0 0.0
    %662 = vmatpush2.msra.mxu0 0.0
    %663 = vmatprep.subr.mxu0 0.0
    %664 = vmatpush2.msra.mxu0 0.0
    %665 = vmatprep.mubr.f32.mxu0 0.0
    %666 = vmatmul.mubr.f32.gmra.mxu0 %v596
    %v667 = vpop.f32.mrf.mxu0
    %v668 = vadd.f32 %v593, %v667
    %v669 = vpop.f32.mrf.mxu0
    %670 = vmatprep.mubr.f32.mxu0 0.0
    %671 = vmatmul.mubr.f32.gmra.mxu0 %v599
    %v672 = vpop.f32.mrf.mxu0
    %v673 = vadd.f32 %v593, %v672
    %v674 = vpop.f32.mrf.mxu0
    %675 = vdwg.mxu0
    %v676 = vadd.f32 %v15, %v668
    %v677 = vadd.f32 %v16, %v673
    %v678 = vsel %vm36, %v676, 0.0
    %679 = vadd.xlane.f32.xlu0 %v678
    %v680 = vpop.xlane.xlu0 %679
    %v681 = vsel %vm36, %v677, 0.0
    %682 = vadd.xlane.f32.xlu0 %v681
    %v683 = vpop.xlane.xlu0 %682
    %v684 = vmul.f32 %v680, %v43
    %v685 = vmul.f32 %v683, %v43
    %v686 = vsub.f32 %v676, %v684
    %v687 = vsub.f32 %v677, %v685
    %v688 = vmul.f32 %v686, %v686
    %v689 = vmul.f32 %v687, %v687
    %v690 = vsel %vm36, %v688, 0.0
    %691 = vadd.xlane.f32.xlu0 %v690
    %v692 = vpop.xlane.xlu0 %691
    %v693 = vsel %vm36, %v689, 0.0
    %694 = vadd.xlane.f32.xlu0 %v693
    %v695 = vpop.xlane.xlu0 %694
    %v696 = vmul.f32 %v692, %v43
    %v697 = vmul.f32 %v695, %v43
    %v698 = vadd.f32 %v696, 1e-06
    %v699 = vadd.f32 %v697, 1e-06
    %v700 = vrsqrt.pop %v698
    %v701 = vrsqrt.pop %v699
    %v702 = vmul.f32 %v686, %v700
    %v703 = vmul.f32 %v687, %v701
    %704 = vrot.lane.b32.xlu0 %v67, 64
    %v705 = vpop.permute.xlu0 %704
    %v707 = vmul.f32 %v702, %v705
    %v708 = vmul.f32 %v703, %v705
    %709 = vrot.lane.b32.xlu0 %v67, 32
    %v710 = vpop.permute.xlu0 %709
    %v712 = vadd.f32 %v707, %v710
    %v713 = vadd.f32 %v708, %v710
    %v714 = vlaneseq
    %v715 = vshrl.u32 %v714, 7
    %v716 = vsub.s32 0, %v715
    %v717 = vrot.slane %v34, %v716
    %v719 = vsel %vm36, %v712, 0
    %v722 = vsel %vm36, %v713, 0
    %724 = vmatprep.subr.mxu0 0.0
    %725 = vmatpush1.msra.mxu0 0.0
    %726 = vmatprep.subr.mxu0 0.0
    %727 = vmatpush1.msra.mxu0 0.0
    %728 = vmatprep.subr.mxu0 0.0
    %729 = vmatpush1.msra.mxu0 0.0
    %730 = vmatprep.subr.mxu0 0.0
    %731 = vmatpush1.msra.mxu0 0.0
    %732 = vmatprep.subr.mxu0 0.0
    %733 = vmatpush1.msra.mxu0 0.0
    %734 = vmatprep.subr.mxu0 0.0
    %735 = vmatpush1.msra.mxu0 0.0
    %736 = vmatprep.subr.mxu0 0.0
    %737 = vmatpush1.msra.mxu0 0.0
    %738 = vmatprep.subr.mxu0 0.0
    %739 = vmatpush1.msra.mxu0 0.0
    %740 = vmatprep.subr.mxu0 0.0
    %741 = vmatpush1.msra.mxu0 0.0
    %742 = vmatprep.subr.mxu0 0.0
    %743 = vmatpush1.msra.mxu0 0.0
    %744 = vmatprep.subr.mxu0 0.0
    %745 = vmatpush1.msra.mxu0 0.0
    %746 = vmatprep.subr.mxu0 0.0
    %747 = vmatpush1.msra.mxu0 0.0
    %748 = vmatprep.subr.mxu0 0.0
    %749 = vmatpush1.msra.mxu0 %v24
    %750 = vmatprep.subr.mxu0 0.0
    %751 = vmatpush1.msra.mxu0 %v23
    %752 = vmatprep.subr.mxu0 0.0
    %753 = vmatpush1.msra.mxu0 %v22
    %754 = vmatprep.subr.mxu0 0.0
    %755 = vmatpush1.msra.mxu0 %v21
    %756 = vmatprep.subr.mxu0 0.0
    %757 = vmatpush2.msra.mxu0 0.0
    %758 = vmatprep.subr.mxu0 0.0
    %759 = vmatpush2.msra.mxu0 0.0
    %760 = vmatprep.subr.mxu0 0.0
    %761 = vmatpush2.msra.mxu0 0.0
    %762 = vmatprep.subr.mxu0 0.0
    %763 = vmatpush2.msra.mxu0 0.0
    %764 = vmatprep.subr.mxu0 0.0
    %765 = vmatpush2.msra.mxu0 0.0
    %766 = vmatprep.subr.mxu0 0.0
    %767 = vmatpush2.msra.mxu0 0.0
    %768 = vmatprep.subr.mxu0 0.0
    %769 = vmatpush2.msra.mxu0 0.0
    %770 = vmatprep.subr.mxu0 0.0
    %771 = vmatpush2.msra.mxu0 0.0
    %772 = vmatprep.subr.mxu0 0.0
    %773 = vmatpush2.msra.mxu0 0.0
    %774 = vmatprep.subr.mxu0 0.0
    %775 = vmatpush2.msra.mxu0 0.0
    %776 = vmatprep.subr.mxu0 0.0
    %777 = vmatpush2.msra.mxu0 0.0
    %778 = vmatprep.subr.mxu0 0.0
    %779 = vmatpush2.msra.mxu0 0.0
    %780 = vmatprep.subr.mxu0 0.0
    %781 = vmatpush2.msra.mxu0 0.0
    %782 = vmatprep.subr.mxu0 0.0
    %783 = vmatpush2.msra.mxu0 0.0
    %784 = vmatprep.subr.mxu0 0.0
    %785 = vmatpush2.msra.mxu0 0.0
    %786 = vmatprep.subr.mxu0 0.0
    %787 = vmatpush2.msra.mxu0 0.0
    %788 = vmatprep.mubr.f32.mxu0 0.0
    %789 = vmatmul.mubr.f32.gmra.mxu0 %v719
    %v790 = vpop.f32.mrf.mxu0
    %v791 = vadd.f32 %v717, %v790
    %v792 = vpop.f32.mrf.mxu0
    %793 = vmatprep.mubr.f32.mxu0 0.0
    %794 = vmatmul.mubr.f32.gmra.mxu0 %v722
    %v795 = vpop.f32.mrf.mxu0
    %v796 = vadd.f32 %v717, %v795
    %v797 = vpop.f32.mrf.mxu0
    %798 = vdwg.mxu0
    %v799 = vmul.f32 %v791, 0.5
    %v800 = vmul.f32 %v796, 0.5
    %v801 = vmul.f32 %v791, 0.044715
    %v802 = vmul.f32 %v796, 0.044715
    %v803 = vmul.f32 %v801, %v791
    %v804 = vmul.f32 %v802, %v796
    %v805 = vmul.f32 %v803, %v791
    %v806 = vmul.f32 %v804, %v796
    %v807 = vadd.f32 %v791, %v805
    %v808 = vadd.f32 %v796, %v806
    %v809 = vmul.f32 %v807, 0.7978846
    %v810 = vmul.f32 %v808, 0.7978846
    %v811 = vtanh.pop %v809
    %v812 = vtanh.pop %v810
    %v813 = vadd.f32 %v811, 1.0
    %v814 = vadd.f32 %v812, 1.0
    %v815 = vmul.f32 %v799, %v813
    %v816 = vmul.f32 %v800, %v814
    %818 = vrot.lane.b32.xlu0 %v717, 64
    %v819 = vpop.permute.xlu0 %818
    %v822 = vsel %vm354, %v815, 0
    %v825 = vsel %vm354, %v816, 0
    %827 = vmatprep.subr.mxu0 0.0
    %828 = vmatpush1.msra.mxu0 0.0
    %829 = vmatprep.subr.mxu0 0.0
    %830 = vmatpush1.msra.mxu0 0.0
    %831 = vmatprep.subr.mxu0 0.0
    %832 = vmatpush1.msra.mxu0 0.0
    %833 = vmatprep.subr.mxu0 0.0
    %834 = vmatpush1.msra.mxu0 0.0
    %835 = vmatprep.subr.mxu0 0.0
    %836 = vmatpush1.msra.mxu0 0.0
    %837 = vmatprep.subr.mxu0 0.0
    %838 = vmatpush1.msra.mxu0 0.0
    %839 = vmatprep.subr.mxu0 0.0
    %840 = vmatpush1.msra.mxu0 0.0
    %841 = vmatprep.subr.mxu0 0.0
    %842 = vmatpush1.msra.mxu0 0.0
    %843 = vmatprep.subr.mxu0 0.0
    %844 = vmatpush1.msra.mxu0 %v32
    %845 = vmatprep.subr.mxu0 0.0
    %846 = vmatpush1.msra.mxu0 %v31
    %847 = vmatprep.subr.mxu0 0.0
    %848 = vmatpush1.msra.mxu0 %v30
    %849 = vmatprep.subr.mxu0 0.0
    %850 = vmatpush1.msra.mxu0 %v29
    %851 = vmatprep.subr.mxu0 0.0
    %852 = vmatpush1.msra.mxu0 %v28
    %853 = vmatprep.subr.mxu0 0.0
    %854 = vmatpush1.msra.mxu0 %v27
    %855 = vmatprep.subr.mxu0 0.0
    %856 = vmatpush1.msra.mxu0 %v26
    %857 = vmatprep.subr.mxu0 0.0
    %858 = vmatpush1.msra.mxu0 %v25
    %859 = vmatprep.subr.mxu0 0.0
    %860 = vmatpush2.msra.mxu0 0.0
    %861 = vmatprep.subr.mxu0 0.0
    %862 = vmatpush2.msra.mxu0 0.0
    %863 = vmatprep.subr.mxu0 0.0
    %864 = vmatpush2.msra.mxu0 0.0
    %865 = vmatprep.subr.mxu0 0.0
    %866 = vmatpush2.msra.mxu0 0.0
    %867 = vmatprep.subr.mxu0 0.0
    %868 = vmatpush2.msra.mxu0 0.0
    %869 = vmatprep.subr.mxu0 0.0
    %870 = vmatpush2.msra.mxu0 0.0
    %871 = vmatprep.subr.mxu0 0.0
    %872 = vmatpush2.msra.mxu0 0.0
    %873 = vmatprep.subr.mxu0 0.0
    %874 = vmatpush2.msra.mxu0 0.0
    %875 = vmatprep.subr.mxu0 0.0
    %876 = vmatpush2.msra.mxu0 0.0
    %877 = vmatprep.subr.mxu0 0.0
    %878 = vmatpush2.msra.mxu0 0.0
    %879 = vmatprep.subr.mxu0 0.0
    %880 = vmatpush2.msra.mxu0 0.0
    %881 = vmatprep.subr.mxu0 0.0
    %882 = vmatpush2.msra.mxu0 0.0
    %883 = vmatprep.subr.mxu0 0.0
    %884 = vmatpush2.msra.mxu0 0.0
    %885 = vmatprep.subr.mxu0 0.0
    %886 = vmatpush2.msra.mxu0 0.0
    %887 = vmatprep.subr.mxu0 0.0
    %888 = vmatpush2.msra.mxu0 0.0
    %889 = vmatprep.subr.mxu0 0.0
    %890 = vmatpush2.msra.mxu0 0.0
    %891 = vmatprep.mubr.f32.mxu0 0.0
    %892 = vmatmul.mubr.f32.gmra.mxu0 %v822
    %v893 = vpop.f32.mrf.mxu0
    %v894 = vadd.f32 %v819, %v893
    %v895 = vpop.f32.mrf.mxu0
    %896 = vmatprep.mubr.f32.mxu0 0.0
    %897 = vmatmul.mubr.f32.gmra.mxu0 %v825
    %v898 = vpop.f32.mrf.mxu0
    %v899 = vadd.f32 %v819, %v898
    %v900 = vpop.f32.mrf.mxu0
    %901 = vdwg.mxu0
    %v902 = vadd.f32 %v676, %v894
    %v903 = vadd.f32 %v677, %v899
    %904 = vst.msk [vmem:[#allocation2] sm:$0xff] %vm36, %v902
    %905 = vst.msk [vmem:[#allocation2 + $0x8] sm:$0xff] %vm36, %v903
    // Predicated region
    $region14: #{siglip_encoder_layer.1} parent=1 // pred_check
      _
    $region15: #{siglip_encoder_layer.1} parent=1 // pred_check_branch
      %907 = sbr.rel (0) target = $region17
    $region16: #{siglip_encoder_layer.1} parent=1 // pred_region
      %s909 = ssub.s32 256, 256
      %910 = vsyncadd [#allocation3], %s909
      %s911 = sshll.u32 [#allocation2], 4
      %s912 = int_to_ptr.vmem [resolvable:$true] %s911
      %917 = dma.vmem_to_hbm [thread:$0]  %s912, 256, %s3, [#allocation3], 128, 128, 8
    $region17: #{siglip_encoder_layer.1} parent=1 // pred_fallthru
      _
    // Predicated region
    $region18: #{siglip_encoder_layer.1} parent=1 // pred_check
      _
    $region19: #{siglip_encoder_layer.1} parent=1 // pred_check_branch
      %919 = sbr.rel (0) target = $region21
    $region20: #{siglip_encoder_layer.1} parent=1 // pred_region
      %920 = dma.done [#allocation3], 256
    $region21: #{siglip_encoder_layer.1} parent=1 // pred_fallthru
      _
    %921 = vsyncpa [#allocation3], 1

</llo_original>
